<compile_context>
chip_gen: v5e
topology: v5e:2x2
jax: 0.10.0
libtpu: 0.0.40
codegen_flags: <defaults>
</compile_context>

<pallas_src>
import functools

import jax
import jax.numpy as jnp
from jax.experimental import pallas as pl
from jax.experimental.pallas import tpu as pltpu

_LANES = 128
_SUBLANES = 8
_TARGET_BLOCK_BYTES = 4 * 1024 * 1024   # per input per grid step, in input dtype


def _cdiv(a, b):
    return -(-a // b)


def _round_down(x, m):
    return (x // m) * m


def _detect_num_tensorcores():
    """2 only on chips with two TensorCores per Pallas device (v7x), else 1."""
    try:
        kind = jax.devices()[0].device_kind.lower()
    except Exception:
        return 1
    if "v7" in kind or "7x" in kind:
        return 2
    return 1


def _mae_kernel(a_ref, b_ref, o_ref, *, blocks, bpc, block_rows, tail_rows,
                fold_rows, has_overrun):
    c = pl.program_id(0)     # core-split axis (CORE_PARALLEL on v7x, size 1 elsewhere)
    i = pl.program_id(1)     # streaming axis (arbitrary; accumulator resident)
    blk = c * bpc + i        # linear block index this step handles

    @pl.when(i == 0)
    def _():
        # Per-core partial-sum block, resident across the inner axis.
        o_ref[...] = jnp.zeros_like(o_ref)

    def accumulate(mask_tail):
        # Cast on the VPU (keeps DMA traffic in the narrow input dtype).
        a = a_ref[...].astype(jnp.float32)
        b = b_ref[...].astype(jnp.float32)
        d = jnp.abs(a - b)
        if mask_tail:
            # Only ever executed for the last, partial block; tail_rows is a
            # static Python int, so this is iota + one compare/select.
            rid = jax.lax.broadcasted_iota(jnp.int32, d.shape, 0)
            d = jnp.where(rid < tail_rows, d, jnp.float32(0.0))
        if fold_rows == _SUBLANES:
            # Fold (block_rows, C) -> (8, C): split of the sublane dim at the
            # native 8-row tile boundary (layout-free), then pure VPU adds.
            part = d.reshape(block_rows // _SUBLANES, _SUBLANES, d.shape[-1]).sum(axis=0)
        else:
            # block_rows not a multiple of 8 (tiny single-block case).
            part = d.sum(axis=0, keepdims=True)
        o_ref[...] += part[None]

    def body():
        if tail_rows != block_rows:
            # Partial last block exists: pay the mask cost only there.
            @pl.when(blk == blocks - 1)
            def _():
                accumulate(True)

            @pl.when(blk != blocks - 1)
            def _():
                accumulate(False)
        else:
            accumulate(False)

    if has_overrun:
        # Overrun steps (blk >= blocks) only happen when the core split does not
        # divide the block count; their (clamped) DMA is skipped compute-wise.
        @pl.when(blk < blocks)
        def _():
            body()
    else:
        body()


def mae_ber_loss(data_, data_target, alpha_=0.0, ae_reduction="mean",
                 block_rows=None, num_cores=None):
    """Pallas implementation of MaeBerLoss.forward."""
    assert data_.shape == data_target.shape
    if ae_reduction == "none":
        # TODO(synk): 'none' (per-element L1, then mean over dim 0) needs an
        # elementwise-output kernel; not implemented here.
        raise NotImplementedError("ae_reduction='none' is not implemented")
    assert ae_reduction in ("mean", "sum")

    n = int(data_.size)
    assert n > 0

    itemsize = jnp.dtype(data_.dtype).itemsize
    granule = max(_SUBLANES, 32 // max(itemsize, 1))   # sublane granule per dtype

    last = int(data_.shape[-1]) if data_.ndim >= 1 else 1
    tail_sum = None

    if (data_.ndim >= 1 and last % _LANES == 0
            and last * granule * itemsize <= 2 * _TARGET_BLOCK_BYTES):
        # Layout-friendly path: keep the native last dim as the lane axis and
        # merge only leading dims (free when the second-to-last dim is
        # sublane-aligned). No tail, no relayout-to-128 reshape.
        C = last
        a2 = data_.reshape(-1, C)
        b2 = data_target.reshape(-1, C)
        R = a2.shape[0]
    else:
        # Generic path: flatten and view as rows of 128 lanes.
        # TODO(synk): this can trigger an XLA relayout copy of both inputs when
        # the trailing dims are not (8,128)-aligned.
        C = _LANES
        a1 = jnp.ravel(data_)
        b1 = jnp.ravel(data_target)
        main = (n // _LANES) * _LANES
        R = main // _LANES
        if R == 0:
            # Tiny input: no kernel needed.
            total = jnp.sum(jnp.abs(a1.astype(jnp.float32) - b1.astype(jnp.float32)))
            if ae_reduction == "mean":
                total = total / jnp.float32(n)
            return (1.0 - alpha_) * total
        if main != n:
            # Sub-128-element tail: tiny plain-jnp sum added to the kernel partials.
            tail_sum = jnp.sum(jnp.abs(a1[main:].astype(jnp.float32)
                                       - b1[main:].astype(jnp.float32)))
            a2 = a1[:main].reshape(R, C)
            b2 = b1[:main].reshape(R, C)
        else:
            a2 = a1.reshape(R, C)
            b2 = b1.reshape(R, C)

    if num_cores is None:
        num_cores = _detect_num_tensorcores()

    if block_rows is None:
        # ~4 MiB per input per step in the input dtype, rounded to the sublane granule.
        tgt = max(granule, _round_down(_TARGET_BLOCK_BYTES // (C * itemsize), granule))
        block_rows = R if R <= tgt else tgt
    else:
        assert 0 < block_rows <= R
        assert block_rows == R or block_rows % granule == 0

    blocks = _cdiv(R, block_rows)
    bpc = _cdiv(blocks, num_cores)               # blocks handled per core
    has_overrun = (num_cores * bpc != blocks)
    tail_rows = R - (blocks - 1) * block_rows    # rows valid in the last block
    fold_rows = _SUBLANES if block_rows % _SUBLANES == 0 else 1

    def in_map(c, i):
        # Clamp overrun iterations onto the last valid block so the auto-DMA
        # never goes out of bounds; the kernel skips their compute.
        return (jnp.minimum(c * bpc + i, blocks - 1), 0)

    kernel = functools.partial(
        _mae_kernel,
        blocks=blocks,
        bpc=bpc,
        block_rows=block_rows,
        tail_rows=tail_rows,
        fold_rows=fold_rows,
        has_overrun=has_overrun,
    )

    block_bytes = block_rows * C * itemsize
    out_bytes = num_cores * fold_rows * C * 4
    # 2 inputs x 2 pipeline buffers + accumulator blocks + slack.
    vmem_limit = max(32 * 1024 * 1024, 4 * block_bytes + 4 * out_bytes + (2 << 20))

    core_sem = pltpu.CORE_PARALLEL if num_cores > 1 else pltpu.ARBITRARY

    partials = pl.pallas_call(
        kernel,
        out_shape=jax.ShapeDtypeStruct((num_cores, fold_rows, C), jnp.float32),
        grid_spec=pltpu.PrefetchScalarGridSpec(
            num_scalar_prefetch=0,
            grid=(num_cores, bpc),
            in_specs=[
                pl.BlockSpec((block_rows, C), in_map),
                pl.BlockSpec((block_rows, C), in_map),
            ],
            out_specs=pl.BlockSpec((1, fold_rows, C), lambda c, i: (c, 0, 0)),
        ),
        compiler_params=pltpu.CompilerParams(
            dimension_semantics=(core_sem, pltpu.ARBITRARY),
            vmem_limit_bytes=int(vmem_limit),
        ),
        cost_estimate=pl.CostEstimate(
            flops=3 * R * C,
            transcendentals=0,
            bytes_accessed=2 * R * C * itemsize + out_bytes,
        ),
    )(a2, b2)

    # Tiny final reduction + scaling, exactly once, outside the kernel.
    total = jnp.sum(partials)
    if tail_sum is not None:
        total = total + tail_sum
    if ae_reduction == "mean":
        total = total / jnp.float32(n)
    return (1.0 - alpha_) * total


if __name__ == "__main__":
    key = jax.random.PRNGKey(0)
    k1, k2, k3, k4, k5, k6 = jax.random.split(key, 6)

    alpha_ = 0.25

    # 1) Primary check: small NCHW tensors (generic flatten path, single block).
    x_shape = (2, 4, 16, 16)
    data_ = jax.random.normal(k1, x_shape, dtype=jnp.float32)
    data_target = jax.random.normal(k2, x_shape, dtype=jnp.float32)
    loss = jax.block_until_ready(mae_ber_loss(data_, data_target, alpha_=alpha_))
    ref = (1.0 - alpha_) * jnp.mean(jnp.abs(data_ - data_target))
    assert jnp.allclose(loss, ref, rtol=1e-5, atol=1e-6), (loss, ref)

    # 1b) ae_reduction='sum' variant on the same tensors.
    loss_s = jax.block_until_ready(
        mae_ber_loss(data_, data_target, alpha_=alpha_, ae_reduction="sum"))
    ref_s = (1.0 - alpha_) * jnp.sum(jnp.abs(data_ - data_target))
    assert jnp.allclose(loss_s, ref_s, rtol=1e-5, atol=1e-4), (loss_s, ref_s)

    # 2) Native-last-dim path (C=256), multi-block grid and partial-last-block
    #    masking (forced via a small block_rows override).
    y_shape = (2, 64, 256)
    y = jax.random.normal(k3, y_shape, dtype=jnp.float32)
    yt = jax.random.normal(k4, y_shape, dtype=jnp.float32)
    loss2 = jax.block_until_ready(mae_ber_loss(y, yt, alpha_=alpha_, block_rows=48))
    ref2 = (1.0 - alpha_) * jnp.mean(jnp.abs(y - yt))
    assert jnp.allclose(loss2, ref2, rtol=1e-5, atol=1e-6), (loss2, ref2)

    # 3) bf16 inputs flow through uncast; the f32 cast happens inside the kernel.
    z_shape = (2, 4, 24, 16)
    z = jax.random.normal(k5, z_shape, dtype=jnp.float32).astype(jnp.bfloat16)
    zt = jax.random.normal(k6, z_shape, dtype=jnp.float32).astype(jnp.bfloat16)
    loss3 = jax.block_until_ready(mae_ber_loss(z, zt, alpha_=alpha_))
    ref3 = (1.0 - alpha_) * jnp.mean(
        jnp.abs(z.astype(jnp.float32) - zt.astype(jnp.float32)))
    assert jnp.allclose(loss3, ref3, rtol=1e-4, atol=1e-4), (loss3, ref3)

    # 4) Ragged size: kernel handles the 128-aligned body, wrapper sums the
    #    sub-128 tail; also exercises the fold_rows=1 (non-multiple-of-8) path.
    w = jax.random.normal(k1, (2, 131), dtype=jnp.float32)
    wt = jax.random.normal(k2, (2, 131), dtype=jnp.float32)
    loss4 = jax.block_until_ready(mae_ber_loss(w, wt, alpha_=alpha_))
    ref4 = (1.0 - alpha_) * jnp.mean(jnp.abs(w - wt))
    assert jnp.allclose(loss4, ref4, rtol=1e-5, atol=1e-6), (loss4, ref4)

    print("KERNEL_OK")
</pallas_src>

<mosaic_0001>
module attributes {stable_mosaic.version = 11 : i64} {
  func.func @_mae_kernel(%arg0: i32, %arg1: i32, %arg2: memref<16x128xf32, #tpu.memory_space<vmem>>, %arg3: memref<16x128xf32, #tpu.memory_space<vmem>>, %arg4: memref<1x8x128xf32, #tpu.memory_space<vmem>>) attributes {dimension_semantics = [#tpu.dimension_semantics<arbitrary>, #tpu.dimension_semantics<arbitrary>], iteration_bounds = array<i64: 1, 1>, scalar_prefetch = 0 : i64, scratch_operands = 0 : i64, tpu.core_type = #tpu.core_type<tc>, window_params = [{transform_indices = @transform_0, window_bounds = array<i64: 16, 128>}, {transform_indices = @transform_1, window_bounds = array<i64: 16, 128>}, {transform_indices = @transform_2, window_bounds = array<i64: 1, 8, 128>}]} {
    %c0_i32 = arith.constant 0 : i32
    %0 = arith.cmpi eq, %arg1, %c0_i32 : i32
    %1 = arith.extui %0 : i1 to i32
    %c0_i32_0 = arith.constant 0 : i32
    %2 = arith.cmpi ne, %1, %c0_i32_0 : i32
    scf.if %2 {
      %cst_10 = arith.constant 0.000000e+00 : f32
      %13 = vector.broadcast %cst_10 : f32 to vector<1x8x128xf32>
      %c0_11 = arith.constant 0 : index
      %c0_12 = arith.constant 0 : index
      %c0_13 = arith.constant 0 : index
      %14 = vector.load %arg4[%c0_11, %c0_12, %c0_13] : memref<1x8x128xf32, #tpu.memory_space<vmem>>, vector<1x8x128xf32>
      tpu.vector_store %arg4[%c0_11, %c0_12, %c0_13], %13 {strides = array<i32>} : memref<1x8x128xf32, #tpu.memory_space<vmem>>, vector<1x8x128xf32>,
    } else {
    }
    %c0 = arith.constant 0 : index
    %c0_1 = arith.constant 0 : index
    %3 = vector.load %arg2[%c0, %c0_1] : memref<16x128xf32, #tpu.memory_space<vmem>>, vector<16x128xf32>
    %c0_2 = arith.constant 0 : index
    %c0_3 = arith.constant 0 : index
    %4 = vector.load %arg3[%c0_2, %c0_3] : memref<16x128xf32, #tpu.memory_space<vmem>>, vector<16x128xf32>
    %5 = arith.subf %3, %4 : vector<16x128xf32>
    %6 = math.absf %5 : vector<16x128xf32>
    %7 = vector.shape_cast %6 : vector<16x128xf32> to vector<2x8x128xf32>
    %cst = arith.constant dense<0.000000e+00> : vector<8x128xf32>
    %8 = vector.multi_reduction <add>, %7, %cst [0] : vector<2x8x128xf32> to vector<8x128xf32>
    %c0_4 = arith.constant 0 : index
    %c0_5 = arith.constant 0 : index
    %c0_6 = arith.constant 0 : index
    %9 = vector.load %arg4[%c0_4, %c0_5, %c0_6] : memref<1x8x128xf32, #tpu.memory_space<vmem>>, vector<1x8x128xf32>
    %10 = vector.shape_cast %8 : vector<8x128xf32> to vector<1x8x128xf32>
    %11 = arith.addf %9, %10 : vector<1x8x128xf32>
    %c0_7 = arith.constant 0 : index
    %c0_8 = arith.constant 0 : index
    %c0_9 = arith.constant 0 : index
    %12 = vector.load %arg4[%c0_7, %c0_8, %c0_9] : memref<1x8x128xf32, #tpu.memory_space<vmem>>, vector<1x8x128xf32>
    tpu.vector_store %arg4[%c0_7, %c0_8, %c0_9], %11 {strides = array<i32>} : memref<1x8x128xf32, #tpu.memory_space<vmem>>, vector<1x8x128xf32>,
    return
  }
  func.func @transform_0(%arg0: i32, %arg1: i32) -> (i32, i32) {
    %c1_i32 = arith.constant 1 : i32
    %0 = arith.muli %arg0, %c1_i32 : i32
    %1 = arith.addi %0, %arg1 : i32
    %c0_i32 = arith.constant 0 : i32
    %2 = arith.minsi %1, %c0_i32 : i32
    %c0_i32_0 = arith.constant 0 : i32
    %c0_i32_1 = arith.constant 0 : i32
    return %2, %c0_i32_0 : i32, i32
  }
  func.func @transform_1(%arg0: i32, %arg1: i32) -> (i32, i32) {
    %c1_i32 = arith.constant 1 : i32
    %0 = arith.muli %arg0, %c1_i32 : i32
    %1 = arith.addi %0, %arg1 : i32
    %c0_i32 = arith.constant 0 : i32
    %2 = arith.minsi %1, %c0_i32 : i32
    %c0_i32_0 = arith.constant 0 : i32
    %c0_i32_1 = arith.constant 0 : i32
    return %2, %c0_i32_0 : i32, i32
  }
  func.func @transform_2(%arg0: i32, %arg1: i32) -> (i32, i32, i32) {
    %c0_i32 = arith.constant 0 : i32
    %c0_i32_0 = arith.constant 0 : i32
    %c0_i32_1 = arith.constant 0 : i32
    return %arg0, %c0_i32, %c0_i32_0 : i32, i32, i32
  }
}

</mosaic_0001>

<llo_original>
// kernel: tpu_custom_call.1
$region0: #{tpu_custom_call.1}
  #allocation0 [shape = 'u32[]', space=smem, size = 0x4, offset = 0x4, fixed_abs, tag = 'smem constant byte address 0x4 - core index']
  #allocation1 [shape = 'u32[72,128]{1,0:T(1,128)}', space=vmem, size = 0x9000, scoped, tag = 'internal scratch']
  %s0 = inlined_call_operand.hbm [shape: f32[16,128], index: 0, kind: input, shape index: {}]
  %s1 = inlined_call_operand.hbm [shape: f32[16,128], index: 1, kind: input, shape index: {}]
  %s2 = inlined_call_operand.hbm [shape: f32[1,8,128], index: 2, kind: output, shape index: {}]
  %s3 = sld [smem:[#allocation0]]
  $region30: #{tpu_custom_call.1} parent=0
    _
  %s5 = ssub.s32 1, %s3
  %s6 = scalar_select 0, %s5, %s3
  $region1: #{tpu_custom_call.1} parent=0
    #allocation2 [shape = 'u8[8192]{0}', space=vmem, size = 0x2000, scoped, tag = 'input window, operand 0, single buffered']
    #allocation3 [shape = 's32[1]{0}', space=sflag, size = 0x4, scoped, tag = 'scoped memory for tpu_custom_call.1']
    #allocation4 [shape = 's32[1]{0}', space=sflag, size = 0x4, scoped, tag = 'scoped memory for tpu_custom_call.1']
    #allocation5 [shape = 'u8[8192]{0}', space=vmem, size = 0x2000, scoped, tag = 'input window, operand 1, single buffered']
    #allocation6 [shape = 's32[1]{0}', space=sflag, size = 0x4, scoped, tag = 'scoped memory for tpu_custom_call.1']
    #allocation7 [shape = 'u8[4096]{0}', space=vmem, size = 0x1000, scoped, tag = 'output window, operand 0, single buffered']
    %7 = vsyncpa [#allocation3], 0
    %8 = vsyncpa [#allocation6], 0
    %9 = vsyncpa [#allocation4], 0
    // Predicated region
    $region2: #{tpu_custom_call.1} parent=1 // pred_check
      _
    $region3: #{tpu_custom_call.1} parent=1 // pred_check_branch
      %11 = sbr.rel (0) target = $region5
    $region4: #{tpu_custom_call.1} parent=1 // pred_region
      %s12 = sadd.s32 0, 0
      %p13 = scmp.lt.s32.totalorder %s12, 0
      %s14 = scalar_select %p13, %s12, 0
      %s15 = smul.u32 2, %s14
      %17 = vsyncadd [#allocation3], 0
      %s18 = smul.addr %s15, 8
      %s19 = scalar_lea.hbm %s0, %s18
      %s20 = sshll.u32 %s19, 4
      %s21 = int_to_ptr.hbm [resolvable:$true] %s20
      %s22 = sshll.u32 [#allocation2], 4
      %s23 = int_to_ptr.vmem [resolvable:$true] %s22
      %28 = dma.hbm_to_vmem [thread:$0]  %s21, 256, %s23, [#allocation3], 128, 128, 8
    $region5: #{tpu_custom_call.1} parent=1 // pred_fallthru
      _
    // Predicated region
    $region6: #{tpu_custom_call.1} parent=1 // pred_check
      _
    $region7: #{tpu_custom_call.1} parent=1 // pred_check_branch
      %30 = sbr.rel (0) target = $region9
    $region8: #{tpu_custom_call.1} parent=1 // pred_region
      %s31 = sadd.s32 0, 0
      %p32 = scmp.lt.s32.totalorder %s31, 0
      %s33 = scalar_select %p32, %s31, 0
      %s34 = smul.u32 2, %s33
      %36 = vsyncadd [#allocation6], 0
      %s37 = smul.addr %s34, 8
      %s38 = scalar_lea.hbm %s1, %s37
      %s39 = sshll.u32 %s38, 4
      %s40 = int_to_ptr.hbm [resolvable:$true] %s39
      %s41 = sshll.u32 [#allocation5], 4
      %s42 = int_to_ptr.vmem [resolvable:$true] %s41
      %47 = dma.hbm_to_vmem [thread:$0]  %s40, 256, %s42, [#allocation6], 128, 128, 8
    $region9: #{tpu_custom_call.1} parent=1 // pred_fallthru
      _
    // Predicated region
    $region10: #{tpu_custom_call.1} parent=1 // pred_check
      _
    $region11: #{tpu_custom_call.1} parent=1 // pred_check_branch
      %49 = sbr.rel (0) target = $region13
    $region12: #{tpu_custom_call.1} parent=1 // pred_region
      %51 = dma.done [#allocation3], 256
    $region13: #{tpu_custom_call.1} parent=1 // pred_fallthru
      _
    // Predicated region
    $region14: #{tpu_custom_call.1} parent=1 // pred_check
      _
    $region15: #{tpu_custom_call.1} parent=1 // pred_check_branch
      %53 = sbr.rel (0) target = $region17
    $region16: #{tpu_custom_call.1} parent=1 // pred_region
      %55 = dma.done [#allocation6], 256
    $region17: #{tpu_custom_call.1} parent=1 // pred_fallthru
      _
    %s56 = sadd.s32 0, 0
    %p57 = scmp.lt.s32.totalorder %s56, 0
    %s58 = scalar_select %p57, %s56, 0
    %s59 = smul.u32 2, %s58
    %s60 = sadd.s32 0, 0
    %p61 = scmp.lt.s32.totalorder %s60, 0
    %s62 = scalar_select %p61, %s60, 0
    %s63 = smul.u32 2, %s62
    %p64 = scmp.eq.s32.totalorder 0, 0
    // Predicated region
    $region18: #{tpu_custom_call.1} parent=1 // pred_check
      %p65 = pneg %p64
    $region19: #{tpu_custom_call.1} parent=1 // pred_check_branch
      %67 = sbr.rel (%p65) target = $region21
    $region20: #{tpu_custom_call.1} parent=1 // pred_region
      %68 = vst [vmem:[#allocation7] sm:$0xff] 0.0
    $region21: #{tpu_custom_call.1} parent=1 // pred_fallthru
      _
    %v69 = vld [vmem:[#allocation2] sm:$0xff]
    %v70 = vld [vmem:[#allocation2 + $0x8] sm:$0xff]
    %v71 = vld [vmem:[#allocation5] sm:$0xff]
    %v72 = vld [vmem:[#allocation5 + $0x8] sm:$0xff]
    %v73 = vsub.f32 %v69, %v71
    %v74 = vsub.f32 %v70, %v72
    %v75 = vand.u32 2147483647, %v73
    %v76 = vand.u32 2147483647, %v74
    %v77 = vadd.f32 %v75, %v76
    %v78 = vld [vmem:[#allocation7] sm:$0xff]
    %v79 = vadd.f32 %v78, %v77
    %80 = vst [vmem:[#allocation7] sm:$0xff] %v79
    // Predicated region
    $region22: #{tpu_custom_call.1} parent=1 // pred_check
      _
    $region23: #{tpu_custom_call.1} parent=1 // pred_check_branch
      %82 = sbr.rel (0) target = $region25
    $region24: #{tpu_custom_call.1} parent=1 // pred_region
      %84 = vsyncadd [#allocation4], 0
      %s86 = sshll.u32 [#allocation7], 4
      %s87 = int_to_ptr.vmem [resolvable:$true] %s86
      %s88 = sshll.u32 %s2, 4
      %s89 = int_to_ptr.hbm [resolvable:$true] %s88
      %91 = dma.vmem_to_hbm [thread:$0]  %s87, 128, %s89, [#allocation4]
    $region25: #{tpu_custom_call.1} parent=1 // pred_fallthru
      _
    // Predicated region
    $region26: #{tpu_custom_call.1} parent=1 // pred_check
      _
    $region27: #{tpu_custom_call.1} parent=1 // pred_check_branch
      %93 = sbr.rel (0) target = $region29
    $region28: #{tpu_custom_call.1} parent=1 // pred_region
      %95 = dma.done [#allocation4], 128
    $region29: #{tpu_custom_call.1} parent=1 // pred_fallthru
      _
    %96 = vsyncpa [#allocation3], 1
    %97 = vsyncpa [#allocation6], 1
    %98 = vsyncpa [#allocation4], 1

</llo_original>
